<compile_context>
chip_gen: v7x
topology: tpu7x:2x2x1
jax: 0.10.0
libtpu: 0.0.40
codegen_flags: <defaults>
</compile_context>

<pallas_src>
import functools

import jax
import jax.numpy as jnp
import numpy as np
from jax.experimental import pallas as pl
from jax.experimental.pallas import tpu as pltpu


def _lstm_recurrence_kernel(gx_ref, h0_ref, c0_ref, whh_ref,
                            hs_ref, hn_ref, cn_ref):
  """One grid step = TB LSTM timesteps (PyTorch gate order i, f, g, o).

  gx_ref : (BC, TB, 4H) f32   precomputed x@W_ih^T + (b_ih + b_hh)
  h0_ref : (BC, H)      f32   initial hidden state (read only at t == 0)
  c0_ref : (BC, H)      f32   initial cell state
  whh_ref: (H, 4H)      bf16  recurrent weight (transposed)
  hs_ref : (BC, TB, H)  f32   per-timestep hidden states (fed to the FC later)
  hn_ref : (BC, H)      f32   final hidden state; ALSO the running carry
  cn_ref : (BC, H)      f32   final cell state;   ALSO the running carry
  """
  t = pl.program_id(1)                       # time-block index ("arbitrary")
  H = hn_ref.shape[-1]
  TB = gx_ref.shape[1]

  # hn/cn output blocks are resident across the whole time axis (constant
  # index_map in t), so they double as the recurrence carry.
  @pl.when(t == 0)
  def _():
    hn_ref[...] = h0_ref[...]
    cn_ref[...] = c0_ref[...]

  h = hn_ref[...]                            # (BC, H)  f32 carry
  c = cn_ref[...]
  w = whh_ref[...]                           # (H, 4H)  bf16, VMEM-resident

  # Static unrolled loop over the TB timesteps of this block (TB is small and
  # static, so all slices below are compile-time views).
  for s in range(TB):
    gates = gx_ref[:, s, :] + jnp.dot(h.astype(w.dtype), w,
                                      preferred_element_type=jnp.float32)
    # NOTE: with H a multiple of 128 these gate slices are lane-aligned; at the
    # tiny demo H=32 they slice inside a vreg, which is acceptable here.
    i = jax.nn.sigmoid(gates[:, 0 * H:1 * H])
    f = jax.nn.sigmoid(gates[:, 1 * H:2 * H])
    g = jnp.tanh(gates[:, 2 * H:3 * H])
    o = jax.nn.sigmoid(gates[:, 3 * H:4 * H])
    c = f * c + i * g
    h = o * jnp.tanh(c)
    hs_ref[:, s, :] = h

  # Write the carry back for the next time block (and as the final output).
  hn_ref[...] = h
  cn_ref[...] = c


def _pick_time_block(seq_len, target=32):
  """Largest legal time block <= target (multiple of 8, or the full length)."""
  if seq_len <= target:
    return seq_len
  for tb in range(target, 0, -1):
    if seq_len % tb == 0 and tb % 8 == 0:
      return tb
  return seq_len


@jax.jit
def speller_forward(x, hidden, params):
  """Mirrors Speller.forward(x, hidden) -> (logits, (h_n, c_n))."""
  h0, c0 = hidden                                   # each (1, B, H)
  emb = params["embedding"][x]                      # (B, S, H) gather (glue)
  B, S, H = emb.shape
  V = params["fc_w"].shape[0]

  mm_dtype = jnp.bfloat16                           # MXU-native matmul inputs

  # ---- (1) Input projection for ALL timesteps: one big (B*S, H)x(H, 4H). ----
  w_ih_T = params["w_ih"].T.astype(mm_dtype)        # (H, 4H)
  bias = (params["b_ih"] + params["b_hh"]).astype(jnp.float32)     # (4H,)
  gates_x = (jnp.dot(emb.reshape(B * S, H).astype(mm_dtype), w_ih_T,
                     preferred_element_type=jnp.float32)
             .reshape(B, S, 4 * H) + bias)          # (B, S, 4H) f32

  w_hh_T = params["w_hh"].T.astype(mm_dtype)        # (H, 4H)
  h0_2d = h0[0].astype(jnp.float32)                 # (B, H)
  c0_2d = c0[0].astype(jnp.float32)

  # ---- (2) Serial LSTM recurrence in Pallas, TB timesteps per grid step. ----
  TB = _pick_time_block(S)
  BC = B           # one batch chunk; pick BC < B on v7x to use both TCs
  grid = (B // BC, S // TB)

  hs, hn, cn = pl.pallas_call(
      _lstm_recurrence_kernel,
      out_shape=(
          jax.ShapeDtypeStruct((B, S, H), jnp.float32),   # hidden states
          jax.ShapeDtypeStruct((B, H), jnp.float32),      # h_n
          jax.ShapeDtypeStruct((B, H), jnp.float32),      # c_n
      ),
      grid_spec=pltpu.PrefetchScalarGridSpec(
          num_scalar_prefetch=0,
          grid=grid,
          in_specs=[
              pl.BlockSpec((BC, TB, 4 * H), lambda b, t: (b, t, 0)),  # gates_x
              pl.BlockSpec((BC, H), lambda b, t: (b, 0)),             # h0
              pl.BlockSpec((BC, H), lambda b, t: (b, 0)),             # c0
              pl.BlockSpec((H, 4 * H), lambda b, t: (0, 0)),          # W_hh^T
          ],
          out_specs=[
              pl.BlockSpec((BC, TB, H), lambda b, t: (b, t, 0)),      # hs
              pl.BlockSpec((BC, H), lambda b, t: (b, 0)),             # h_n
              pl.BlockSpec((BC, H), lambda b, t: (b, 0)),             # c_n
          ],
      ),
      compiler_params=pltpu.CompilerParams(
          dimension_semantics=("parallel", "arbitrary")),  # time = recurrence
  )(gates_x, h0_2d, c0_2d, w_hh_T)

  # ---- (3) Output projection hoisted out of the loop: one (B*S, H)x(H, V). --
  w_fc_T = params["fc_w"].T.astype(mm_dtype)        # (H, V)
  logits = (jnp.dot(hs.reshape(B * S, H).astype(mm_dtype), w_fc_T,
                    preferred_element_type=jnp.float32)
            .reshape(B, S, V) + params["fc_b"].astype(jnp.float32))

  return logits, (hn[None], cn[None])


def _ref_forward(x, hidden, params):
  """Pure-JAX f32 reference with identical PyTorch LSTM semantics."""
  h0, c0 = hidden
  emb = params["embedding"][x].astype(jnp.float32)

  def step(carry, x_t):
    h, c = carry
    gates = (x_t @ params["w_ih"].T + h @ params["w_hh"].T
             + params["b_ih"] + params["b_hh"])
    i, f, g, o = jnp.split(gates, 4, axis=-1)
    i, f, o = jax.nn.sigmoid(i), jax.nn.sigmoid(f), jax.nn.sigmoid(o)
    g = jnp.tanh(g)
    c = f * c + i * g
    h = o * jnp.tanh(c)
    return (h, c), h

  (hn, cn), hs = jax.lax.scan(step, (h0[0], c0[0]),
                              jnp.transpose(emb, (1, 0, 2)))
  hs = jnp.transpose(hs, (1, 0, 2))
  logits = hs @ params["fc_w"].T + params["fc_b"]
  return logits, (hn[None], cn[None])


def _init_params(key, vocab_size, hidden_dim):
  ks = jax.random.split(key, 7)
  s = 0.1
  return {
      "embedding": s * jax.random.normal(ks[0], (vocab_size, hidden_dim),
                                         jnp.float32),
      "w_ih": s * jax.random.normal(ks[1], (4 * hidden_dim, hidden_dim),
                                    jnp.float32),
      "w_hh": s * jax.random.normal(ks[2], (4 * hidden_dim, hidden_dim),
                                    jnp.float32),
      "b_ih": s * jax.random.normal(ks[3], (4 * hidden_dim,), jnp.float32),
      "b_hh": s * jax.random.normal(ks[4], (4 * hidden_dim,), jnp.float32),
      "fc_w": s * jax.random.normal(ks[5], (vocab_size, hidden_dim),
                                    jnp.float32),
      "fc_b": s * jax.random.normal(ks[6], (vocab_size,), jnp.float32),
  }


if __name__ == "__main__":
  VOCAB, HIDDEN, BATCH, SEQ = 16, 32, 2, 8

  key = jax.random.PRNGKey(0)
  kp, kx, kh, kc = jax.random.split(key, 4)
  params = _init_params(kp, VOCAB, HIDDEN)

  x = jax.random.randint(kx, (BATCH, SEQ), 0, VOCAB, dtype=jnp.int32)
  h0 = 0.1 * jax.random.normal(kh, (1, BATCH, HIDDEN), jnp.float32)
  c0 = 0.1 * jax.random.normal(kc, (1, BATCH, HIDDEN), jnp.float32)

  logits, (hn, cn) = speller_forward(x, (h0, c0), params)
  jax.block_until_ready((logits, hn, cn))

  ref_logits, (ref_hn, ref_cn) = _ref_forward(x, (h0, c0), params)
  # bf16 matmul inputs (f32 accumulation) => loosened tolerances vs f32 ref.
  np.testing.assert_allclose(np.asarray(logits), np.asarray(ref_logits),
                             rtol=2e-2, atol=2e-2)
  np.testing.assert_allclose(np.asarray(hn), np.asarray(ref_hn),
                             rtol=2e-2, atol=2e-2)
  np.testing.assert_allclose(np.asarray(cn), np.asarray(ref_cn),
                             rtol=2e-2, atol=2e-2)

  assert logits.shape == (BATCH, SEQ, VOCAB)
  assert hn.shape == (1, BATCH, HIDDEN) and cn.shape == (1, BATCH, HIDDEN)
  print("KERNEL_OK")
</pallas_src>

<mosaic_0001>
module attributes {stable_mosaic.version = 11 : i64} {
  func.func @_lstm_recurrence_kernel(%arg0: i32, %arg1: i32, %arg2: memref<2x8x128xf32, #tpu.memory_space<vmem>>, %arg3: memref<2x32xf32, #tpu.memory_space<vmem>>, %arg4: memref<2x32xf32, #tpu.memory_space<vmem>>, %arg5: memref<32x128xbf16, #tpu.memory_space<vmem>>, %arg6: memref<2x8x32xf32, #tpu.memory_space<vmem>>, %arg7: memref<2x32xf32, #tpu.memory_space<vmem>>, %arg8: memref<2x32xf32, #tpu.memory_space<vmem>>) attributes {dimension_semantics = [#tpu.dimension_semantics<parallel>, #tpu.dimension_semantics<arbitrary>], iteration_bounds = array<i64: 1, 1>, scalar_prefetch = 0 : i64, scratch_operands = 0 : i64, tpu.core_type = #tpu.core_type<tc>, window_params = [{transform_indices = @transform_0, window_bounds = array<i64: 2, 8, 128>}, {transform_indices = @transform_1, window_bounds = array<i64: 2, 32>}, {transform_indices = @transform_2, window_bounds = array<i64: 2, 32>}, {pipeline_mode = #tpu.pipeline_mode<synchronous>, transform_indices = @transform_3, window_bounds = array<i64: 32, 128>}, {transform_indices = @transform_4, window_bounds = array<i64: 2, 8, 32>}, {transform_indices = @transform_5, window_bounds = array<i64: 2, 32>}, {transform_indices = @transform_6, window_bounds = array<i64: 2, 32>}]} {
    %c0_i32 = arith.constant 0 : i32
    %0 = arith.cmpi eq, %arg1, %c0_i32 : i32
    %1 = arith.extui %0 : i1 to i32
    %c0_i32_0 = arith.constant 0 : i32
    %2 = arith.cmpi ne, %1, %c0_i32_0 : i32
    scf.if %2 {
      %c0_82 = arith.constant 0 : index
      %c0_83 = arith.constant 0 : index
      %272 = vector.load %arg3[%c0_82, %c0_83] : memref<2x32xf32, #tpu.memory_space<vmem>>, vector<2x32xf32>
      %c0_84 = arith.constant 0 : index
      %c0_85 = arith.constant 0 : index
      %273 = vector.load %arg7[%c0_84, %c0_85] : memref<2x32xf32, #tpu.memory_space<vmem>>, vector<2x32xf32>
      tpu.vector_store %arg7[%c0_84, %c0_85], %272 {strides = array<i32>} : memref<2x32xf32, #tpu.memory_space<vmem>>, vector<2x32xf32>,
      %c0_86 = arith.constant 0 : index
      %c0_87 = arith.constant 0 : index
      %274 = vector.load %arg4[%c0_86, %c0_87] : memref<2x32xf32, #tpu.memory_space<vmem>>, vector<2x32xf32>
      %c0_88 = arith.constant 0 : index
      %c0_89 = arith.constant 0 : index
      %275 = vector.load %arg8[%c0_88, %c0_89] : memref<2x32xf32, #tpu.memory_space<vmem>>, vector<2x32xf32>
      tpu.vector_store %arg8[%c0_88, %c0_89], %274 {strides = array<i32>} : memref<2x32xf32, #tpu.memory_space<vmem>>, vector<2x32xf32>,
    } else {
    }
    %c0 = arith.constant 0 : index
    %c0_1 = arith.constant 0 : index
    %3 = vector.load %arg7[%c0, %c0_1] : memref<2x32xf32, #tpu.memory_space<vmem>>, vector<2x32xf32>
    %c0_2 = arith.constant 0 : index
    %c0_3 = arith.constant 0 : index
    %4 = vector.load %arg8[%c0_2, %c0_3] : memref<2x32xf32, #tpu.memory_space<vmem>>, vector<2x32xf32>
    %c0_4 = arith.constant 0 : index
    %c0_5 = arith.constant 0 : index
    %5 = vector.load %arg5[%c0_4, %c0_5] : memref<32x128xbf16, #tpu.memory_space<vmem>>, vector<32x128xbf16>
    %c0_6 = arith.constant 0 : index
    %c0_7 = arith.constant 0 : index
    %c0_8 = arith.constant 0 : index
    %6 = vector.load %arg2[%c0_6, %c0_7, %c0_8] : memref<2x8x128xf32, #tpu.memory_space<vmem>>, vector<2x1x128xf32>
    %7 = vector.shape_cast %6 : vector<2x1x128xf32> to vector<2x128xf32>
    %8 = arith.truncf %3 : vector<2x32xf32> to vector<2x32xbf16>
    %cst = arith.constant dense<0.000000e+00> : vector<2x128xf32>
    %9 = tpu.matmul %8, %5, %cst {dimension_numbers = #tpu.dot_dimension_numbers<[1], [0], [0], [1], [0, 0, 1, 1], [], []>} : vector<2x32xbf16>, vector<32x128xbf16>, vector<2x128xf32> -> vector<2x128xf32>
    %10 = arith.addf %7, %9 : vector<2x128xf32>
    %11 = vector.extract_strided_slice %10 {offsets = [0, 0], sizes = [2, 32], strides = [1, 1]} : vector<2x128xf32> to vector<2x32xf32>
    %12 = arith.negf %11 : vector<2x32xf32>
    %13 = math.exp %12 : vector<2x32xf32>
    %cst_9 = arith.constant 1.000000e+00 : f32
    %14 = vector.broadcast %cst_9 : f32 to vector<2x32xf32>
    %15 = arith.addf %14, %13 : vector<2x32xf32>
    %16 = arith.divf %14, %15 : vector<2x32xf32>
    %17 = vector.extract_strided_slice %10 {offsets = [0, 32], sizes = [2, 32], strides = [1, 1]} : vector<2x128xf32> to vector<2x32xf32>
    %18 = arith.negf %17 : vector<2x32xf32>
    %19 = math.exp %18 : vector<2x32xf32>
    %cst_10 = arith.constant 1.000000e+00 : f32
    %20 = vector.broadcast %cst_10 : f32 to vector<2x32xf32>
    %21 = arith.addf %20, %19 : vector<2x32xf32>
    %22 = arith.divf %20, %21 : vector<2x32xf32>
    %23 = vector.extract_strided_slice %10 {offsets = [0, 64], sizes = [2, 32], strides = [1, 1]} : vector<2x128xf32> to vector<2x32xf32>
    %24 = math.tanh %23 : vector<2x32xf32>
    %25 = vector.extract_strided_slice %10 {offsets = [0, 96], sizes = [2, 32], strides = [1, 1]} : vector<2x128xf32> to vector<2x32xf32>
    %26 = arith.negf %25 : vector<2x32xf32>
    %27 = math.exp %26 : vector<2x32xf32>
    %cst_11 = arith.constant 1.000000e+00 : f32
    %28 = vector.broadcast %cst_11 : f32 to vector<2x32xf32>
    %29 = arith.addf %28, %27 : vector<2x32xf32>
    %30 = arith.divf %28, %29 : vector<2x32xf32>
    %31 = arith.mulf %22, %4 : vector<2x32xf32>
    %32 = arith.mulf %16, %24 : vector<2x32xf32>
    %33 = arith.addf %31, %32 : vector<2x32xf32>
    %34 = math.tanh %33 : vector<2x32xf32>
    %35 = arith.mulf %30, %34 : vector<2x32xf32>
    %c0_12 = arith.constant 0 : index
    %c0_13 = arith.constant 0 : index
    %c0_14 = arith.constant 0 : index
    %36 = vector.load %arg6[%c0_12, %c0_13, %c0_14] : memref<2x8x32xf32, #tpu.memory_space<vmem>>, vector<2x1x32xf32>
    %37 = vector.shape_cast %36 : vector<2x1x32xf32> to vector<2x32xf32>
    %38 = vector.shape_cast %35 : vector<2x32xf32> to vector<2x1x32xf32>
    tpu.vector_store %arg6[%c0_12, %c0_13, %c0_14], %38 {strides = array<i32>} : memref<2x8x32xf32, #tpu.memory_space<vmem>>, vector<2x1x32xf32>,
    %c0_15 = arith.constant 0 : index
    %c1 = arith.constant 1 : index
    %c0_16 = arith.constant 0 : index
    %39 = vector.load %arg2[%c0_15, %c1, %c0_16] : memref<2x8x128xf32, #tpu.memory_space<vmem>>, vector<2x1x128xf32>
    %40 = vector.shape_cast %39 : vector<2x1x128xf32> to vector<2x128xf32>
    %41 = arith.truncf %35 : vector<2x32xf32> to vector<2x32xbf16>
    %cst_17 = arith.constant dense<0.000000e+00> : vector<2x128xf32>
    %42 = tpu.matmul %41, %5, %cst_17 {dimension_numbers = #tpu.dot_dimension_numbers<[1], [0], [0], [1], [0, 0, 1, 1], [], []>} : vector<2x32xbf16>, vector<32x128xbf16>, vector<2x128xf32> -> vector<2x128xf32>
    %43 = arith.addf %40, %42 : vector<2x128xf32>
    %44 = vector.extract_strided_slice %43 {offsets = [0, 0], sizes = [2, 32], strides = [1, 1]} : vector<2x128xf32> to vector<2x32xf32>
    %45 = arith.negf %44 : vector<2x32xf32>
    %46 = math.exp %45 : vector<2x32xf32>
    %cst_18 = arith.constant 1.000000e+00 : f32
    %47 = vector.broadcast %cst_18 : f32 to vector<2x32xf32>
    %48 = arith.addf %47, %46 : vector<2x32xf32>
    %49 = arith.divf %47, %48 : vector<2x32xf32>
    %50 = vector.extract_strided_slice %43 {offsets = [0, 32], sizes = [2, 32], strides = [1, 1]} : vector<2x128xf32> to vector<2x32xf32>
    %51 = arith.negf %50 : vector<2x32xf32>
    %52 = math.exp %51 : vector<2x32xf32>
    %cst_19 = arith.constant 1.000000e+00 : f32
    %53 = vector.broadcast %cst_19 : f32 to vector<2x32xf32>
    %54 = arith.addf %53, %52 : vector<2x32xf32>
    %55 = arith.divf %53, %54 : vector<2x32xf32>
    %56 = vector.extract_strided_slice %43 {offsets = [0, 64], sizes = [2, 32], strides = [1, 1]} : vector<2x128xf32> to vector<2x32xf32>
    %57 = math.tanh %56 : vector<2x32xf32>
    %58 = vector.extract_strided_slice %43 {offsets = [0, 96], sizes = [2, 32], strides = [1, 1]} : vector<2x128xf32> to vector<2x32xf32>
    %59 = arith.negf %58 : vector<2x32xf32>
    %60 = math.exp %59 : vector<2x32xf32>
    %cst_20 = arith.constant 1.000000e+00 : f32
    %61 = vector.broadcast %cst_20 : f32 to vector<2x32xf32>
    %62 = arith.addf %61, %60 : vector<2x32xf32>
    %63 = arith.divf %61, %62 : vector<2x32xf32>
    %64 = arith.mulf %55, %33 : vector<2x32xf32>
    %65 = arith.mulf %49, %57 : vector<2x32xf32>
    %66 = arith.addf %64, %65 : vector<2x32xf32>
    %67 = math.tanh %66 : vector<2x32xf32>
    %68 = arith.mulf %63, %67 : vector<2x32xf32>
    %c0_21 = arith.constant 0 : index
    %c1_22 = arith.constant 1 : index
    %c0_23 = arith.constant 0 : index
    %69 = vector.load %arg6[%c0_21, %c1_22, %c0_23] : memref<2x8x32xf32, #tpu.memory_space<vmem>>, vector<2x1x32xf32>
    %70 = vector.shape_cast %69 : vector<2x1x32xf32> to vector<2x32xf32>
    %71 = vector.shape_cast %68 : vector<2x32xf32> to vector<2x1x32xf32>
    tpu.vector_store %arg6[%c0_21, %c1_22, %c0_23], %71 {strides = array<i32>} : memref<2x8x32xf32, #tpu.memory_space<vmem>>, vector<2x1x32xf32>,
    %c0_24 = arith.constant 0 : index
    %c2 = arith.constant 2 : index
    %c0_25 = arith.constant 0 : index
    %72 = vector.load %arg2[%c0_24, %c2, %c0_25] : memref<2x8x128xf32, #tpu.memory_space<vmem>>, vector<2x1x128xf32>
    %73 = vector.shape_cast %72 : vector<2x1x128xf32> to vector<2x128xf32>
    %74 = arith.truncf %68 : vector<2x32xf32> to vector<2x32xbf16>
    %cst_26 = arith.constant dense<0.000000e+00> : vector<2x128xf32>
    %75 = tpu.matmul %74, %5, %cst_26 {dimension_numbers = #tpu.dot_dimension_numbers<[1], [0], [0], [1], [0, 0, 1, 1], [], []>} : vector<2x32xbf16>, vector<32x128xbf16>, vector<2x128xf32> -> vector<2x128xf32>
    %76 = arith.addf %73, %75 : vector<2x128xf32>
    %77 = vector.extract_strided_slice %76 {offsets = [0, 0], sizes = [2, 32], strides = [1, 1]} : vector<2x128xf32> to vector<2x32xf32>
    %78 = arith.negf %77 : vector<2x32xf32>
    %79 = math.exp %78 : vector<2x32xf32>
    %cst_27 = arith.constant 1.000000e+00 : f32
    %80 = vector.broadcast %cst_27 : f32 to vector<2x32xf32>
    %81 = arith.addf %80, %79 : vector<2x32xf32>
    %82 = arith.divf %80, %81 : vector<2x32xf32>
    %83 = vector.extract_strided_slice %76 {offsets = [0, 32], sizes = [2, 32], strides = [1, 1]} : vector<2x128xf32> to vector<2x32xf32>
    %84 = arith.negf %83 : vector<2x32xf32>
    %85 = math.exp %84 : vector<2x32xf32>
    %cst_28 = arith.constant 1.000000e+00 : f32
    %86 = vector.broadcast %cst_28 : f32 to vector<2x32xf32>
    %87 = arith.addf %86, %85 : vector<2x32xf32>
    %88 = arith.divf %86, %87 : vector<2x32xf32>
    %89 = vector.extract_strided_slice %76 {offsets = [0, 64], sizes = [2, 32], strides = [1, 1]} : vector<2x128xf32> to vector<2x32xf32>
    %90 = math.tanh %89 : vector<2x32xf32>
    %91 = vector.extract_strided_slice %76 {offsets = [0, 96], sizes = [2, 32], strides = [1, 1]} : vector<2x128xf32> to vector<2x32xf32>
    %92 = arith.negf %91 : vector<2x32xf32>
    %93 = math.exp %92 : vector<2x32xf32>
    %cst_29 = arith.constant 1.000000e+00 : f32
    %94 = vector.broadcast %cst_29 : f32 to vector<2x32xf32>
    %95 = arith.addf %94, %93 : vector<2x32xf32>
    %96 = arith.divf %94, %95 : vector<2x32xf32>
    %97 = arith.mulf %88, %66 : vector<2x32xf32>
    %98 = arith.mulf %82, %90 : vector<2x32xf32>
    %99 = arith.addf %97, %98 : vector<2x32xf32>
    %100 = math.tanh %99 : vector<2x32xf32>
    %101 = arith.mulf %96, %100 : vector<2x32xf32>
    %c0_30 = arith.constant 0 : index
    %c2_31 = arith.constant 2 : index
    %c0_32 = arith.constant 0 : index
    %102 = vector.load %arg6[%c0_30, %c2_31, %c0_32] : memref<2x8x32xf32, #tpu.memory_space<vmem>>, vector<2x1x32xf32>
    %103 = vector.shape_cast %102 : vector<2x1x32xf32> to vector<2x32xf32>
    %104 = vector.shape_cast %101 : vector<2x32xf32> to vector<2x1x32xf32>
    tpu.vector_store %arg6[%c0_30, %c2_31, %c0_32], %104 {strides = array<i32>} : memref<2x8x32xf32, #tpu.memory_space<vmem>>, vector<2x1x32xf32>,
    %c0_33 = arith.constant 0 : index
    %c3 = arith.constant 3 : index
    %c0_34 = arith.constant 0 : index
    %105 = vector.load %arg2[%c0_33, %c3, %c0_34] : memref<2x8x128xf32, #tpu.memory_space<vmem>>, vector<2x1x128xf32>
    %106 = vector.shape_cast %105 : vector<2x1x128xf32> to vector<2x128xf32>
    %107 = arith.truncf %101 : vector<2x32xf32> to vector<2x32xbf16>
    %cst_35 = arith.constant dense<0.000000e+00> : vector<2x128xf32>
    %108 = tpu.matmul %107, %5, %cst_35 {dimension_numbers = #tpu.dot_dimension_numbers<[1], [0], [0], [1], [0, 0, 1, 1], [], []>} : vector<2x32xbf16>, vector<32x128xbf16>, vector<2x128xf32> -> vector<2x128xf32>
    %109 = arith.addf %106, %108 : vector<2x128xf32>
    %110 = vector.extract_strided_slice %109 {offsets = [0, 0], sizes = [2, 32], strides = [1, 1]} : vector<2x128xf32> to vector<2x32xf32>
    %111 = arith.negf %110 : vector<2x32xf32>
    %112 = math.exp %111 : vector<2x32xf32>
    %cst_36 = arith.constant 1.000000e+00 : f32
    %113 = vector.broadcast %cst_36 : f32 to vector<2x32xf32>
    %114 = arith.addf %113, %112 : vector<2x32xf32>
    %115 = arith.divf %113, %114 : vector<2x32xf32>
    %116 = vector.extract_strided_slice %109 {offsets = [0, 32], sizes = [2, 32], strides = [1, 1]} : vector<2x128xf32> to vector<2x32xf32>
    %117 = arith.negf %116 : vector<2x32xf32>
    %118 = math.exp %117 : vector<2x32xf32>
    %cst_37 = arith.constant 1.000000e+00 : f32
    %119 = vector.broadcast %cst_37 : f32 to vector<2x32xf32>
    %120 = arith.addf %119, %118 : vector<2x32xf32>
    %121 = arith.divf %119, %120 : vector<2x32xf32>
    %122 = vector.extract_strided_slice %109 {offsets = [0, 64], sizes = [2, 32], strides = [1, 1]} : vector<2x128xf32> to vector<2x32xf32>
    %123 = math.tanh %122 : vector<2x32xf32>
    %124 = vector.extract_strided_slice %109 {offsets = [0, 96], sizes = [2, 32], strides = [1, 1]} : vector<2x128xf32> to vector<2x32xf32>
    %125 = arith.negf %124 : vector<2x32xf32>
    %126 = math.exp %125 : vector<2x32xf32>
    %cst_38 = arith.constant 1.000000e+00 : f32
    %127 = vector.broadcast %cst_38 : f32 to vector<2x32xf32>
    %128 = arith.addf %127, %126 : vector<2x32xf32>
    %129 = arith.divf %127, %128 : vector<2x32xf32>
    %130 = arith.mulf %121, %99 : vector<2x32xf32>
    %131 = arith.mulf %115, %123 : vector<2x32xf32>
    %132 = arith.addf %130, %131 : vector<2x32xf32>
    %133 = math.tanh %132 : vector<2x32xf32>
    %134 = arith.mulf %129, %133 : vector<2x32xf32>
    %c0_39 = arith.constant 0 : index
    %c3_40 = arith.constant 3 : index
    %c0_41 = arith.constant 0 : index
    %135 = vector.load %arg6[%c0_39, %c3_40, %c0_41] : memref<2x8x32xf32, #tpu.memory_space<vmem>>, vector<2x1x32xf32>
    %136 = vector.shape_cast %135 : vector<2x1x32xf32> to vector<2x32xf32>
    %137 = vector.shape_cast %134 : vector<2x32xf32> to vector<2x1x32xf32>
    tpu.vector_store %arg6[%c0_39, %c3_40, %c0_41], %137 {strides = array<i32>} : memref<2x8x32xf32, #tpu.memory_space<vmem>>, vector<2x1x32xf32>,
    %c0_42 = arith.constant 0 : index
    %c4 = arith.constant 4 : index
    %c0_43 = arith.constant 0 : index
    %138 = vector.load %arg2[%c0_42, %c4, %c0_43] : memref<2x8x128xf32, #tpu.memory_space<vmem>>, vector<2x1x128xf32>
    %139 = vector.shape_cast %138 : vector<2x1x128xf32> to vector<2x128xf32>
    %140 = arith.truncf %134 : vector<2x32xf32> to vector<2x32xbf16>
    %cst_44 = arith.constant dense<0.000000e+00> : vector<2x128xf32>
    %141 = tpu.matmul %140, %5, %cst_44 {dimension_numbers = #tpu.dot_dimension_numbers<[1], [0], [0], [1], [0, 0, 1, 1], [], []>} : vector<2x32xbf16>, vector<32x128xbf16>, vector<2x128xf32> -> vector<2x128xf32>
    %142 = arith.addf %139, %141 : vector<2x128xf32>
    %143 = vector.extract_strided_slice %142 {offsets = [0, 0], sizes = [2, 32], strides = [1, 1]} : vector<2x128xf32> to vector<2x32xf32>
    %144 = arith.negf %143 : vector<2x32xf32>
    %145 = math.exp %144 : vector<2x32xf32>
    %cst_45 = arith.constant 1.000000e+00 : f32
    %146 = vector.broadcast %cst_45 : f32 to vector<2x32xf32>
    %147 = arith.addf %146, %145 : vector<2x32xf32>
    %148 = arith.divf %146, %147 : vector<2x32xf32>
    %149 = vector.extract_strided_slice %142 {offsets = [0, 32], sizes = [2, 32], strides = [1, 1]} : vector<2x128xf32> to vector<2x32xf32>
    %150 = arith.negf %149 : vector<2x32xf32>
    %151 = math.exp %150 : vector<2x32xf32>
    %cst_46 = arith.constant 1.000000e+00 : f32
    %152 = vector.broadcast %cst_46 : f32 to vector<2x32xf32>
    %153 = arith.addf %152, %151 : vector<2x32xf32>
    %154 = arith.divf %152, %153 : vector<2x32xf32>
    %155 = vector.extract_strided_slice %142 {offsets = [0, 64], sizes = [2, 32], strides = [1, 1]} : vector<2x128xf32> to vector<2x32xf32>
    %156 = math.tanh %155 : vector<2x32xf32>
    %157 = vector.extract_strided_slice %142 {offsets = [0, 96], sizes = [2, 32], strides = [1, 1]} : vector<2x128xf32> to vector<2x32xf32>
    %158 = arith.negf %157 : vector<2x32xf32>
    %159 = math.exp %158 : vector<2x32xf32>
    %cst_47 = arith.constant 1.000000e+00 : f32
    %160 = vector.broadcast %cst_47 : f32 to vector<2x32xf32>
    %161 = arith.addf %160, %159 : vector<2x32xf32>
    %162 = arith.divf %160, %161 : vector<2x32xf32>
    %163 = arith.mulf %154, %132 : vector<2x32xf32>
    %164 = arith.mulf %148, %156 : vector<2x32xf32>
    %165 = arith.addf %163, %164 : vector<2x32xf32>
    %166 = math.tanh %165 : vector<2x32xf32>
    %167 = arith.mulf %162, %166 : vector<2x32xf32>
    %c0_48 = arith.constant 0 : index
    %c4_49 = arith.constant 4 : index
    %c0_50 = arith.constant 0 : index
    %168 = vector.load %arg6[%c0_48, %c4_49, %c0_50] : memref<2x8x32xf32, #tpu.memory_space<vmem>>, vector<2x1x32xf32>
    %169 = vector.shape_cast %168 : vector<2x1x32xf32> to vector<2x32xf32>
    %170 = vector.shape_cast %167 : vector<2x32xf32> to vector<2x1x32xf32>
    tpu.vector_store %arg6[%c0_48, %c4_49, %c0_50], %170 {strides = array<i32>} : memref<2x8x32xf32, #tpu.memory_space<vmem>>, vector<2x1x32xf32>,
    %c0_51 = arith.constant 0 : index
    %c5 = arith.constant 5 : index
    %c0_52 = arith.constant 0 : index
    %171 = vector.load %arg2[%c0_51, %c5, %c0_52] : memref<2x8x128xf32, #tpu.memory_space<vmem>>, vector<2x1x128xf32>
    %172 = vector.shape_cast %171 : vector<2x1x128xf32> to vector<2x128xf32>
    %173 = arith.truncf %167 : vector<2x32xf32> to vector<2x32xbf16>
    %cst_53 = arith.constant dense<0.000000e+00> : vector<2x128xf32>
    %174 = tpu.matmul %173, %5, %cst_53 {dimension_numbers = #tpu.dot_dimension_numbers<[1], [0], [0], [1], [0, 0, 1, 1], [], []>} : vector<2x32xbf16>, vector<32x128xbf16>, vector<2x128xf32> -> vector<2x128xf32>
    %175 = arith.addf %172, %174 : vector<2x128xf32>
    %176 = vector.extract_strided_slice %175 {offsets = [0, 0], sizes = [2, 32], strides = [1, 1]} : vector<2x128xf32> to vector<2x32xf32>
    %177 = arith.negf %176 : vector<2x32xf32>
    %178 = math.exp %177 : vector<2x32xf32>
    %cst_54 = arith.constant 1.000000e+00 : f32
    %179 = vector.broadcast %cst_54 : f32 to vector<2x32xf32>
    %180 = arith.addf %179, %178 : vector<2x32xf32>
    %181 = arith.divf %179, %180 : vector<2x32xf32>
    %182 = vector.extract_strided_slice %175 {offsets = [0, 32], sizes = [2, 32], strides = [1, 1]} : vector<2x128xf32> to vector<2x32xf32>
    %183 = arith.negf %182 : vector<2x32xf32>
    %184 = math.exp %183 : vector<2x32xf32>
    %cst_55 = arith.constant 1.000000e+00 : f32
    %185 = vector.broadcast %cst_55 : f32 to vector<2x32xf32>
    %186 = arith.addf %185, %184 : vector<2x32xf32>
    %187 = arith.divf %185, %186 : vector<2x32xf32>
    %188 = vector.extract_strided_slice %175 {offsets = [0, 64], sizes = [2, 32], strides = [1, 1]} : vector<2x128xf32> to vector<2x32xf32>
    %189 = math.tanh %188 : vector<2x32xf32>
    %190 = vector.extract_strided_slice %175 {offsets = [0, 96], sizes = [2, 32], strides = [1, 1]} : vector<2x128xf32> to vector<2x32xf32>
    %191 = arith.negf %190 : vector<2x32xf32>
    %192 = math.exp %191 : vector<2x32xf32>
    %cst_56 = arith.constant 1.000000e+00 : f32
    %193 = vector.broadcast %cst_56 : f32 to vector<2x32xf32>
    %194 = arith.addf %193, %192 : vector<2x32xf32>
    %195 = arith.divf %193, %194 : vector<2x32xf32>
    %196 = arith.mulf %187, %165 : vector<2x32xf32>
    %197 = arith.mulf %181, %189 : vector<2x32xf32>
    %198 = arith.addf %196, %197 : vector<2x32xf32>
    %199 = math.tanh %198 : vector<2x32xf32>
    %200 = arith.mulf %195, %199 : vector<2x32xf32>
    %c0_57 = arith.constant 0 : index
    %c5_58 = arith.constant 5 : index
    %c0_59 = arith.constant 0 : index
    %201 = vector.load %arg6[%c0_57, %c5_58, %c0_59] : memref<2x8x32xf32, #tpu.memory_space<vmem>>, vector<2x1x32xf32>
    %202 = vector.shape_cast %201 : vector<2x1x32xf32> to vector<2x32xf32>
    %203 = vector.shape_cast %200 : vector<2x32xf32> to vector<2x1x32xf32>
    tpu.vector_store %arg6[%c0_57, %c5_58, %c0_59], %203 {strides = array<i32>} : memref<2x8x32xf32, #tpu.memory_space<vmem>>, vector<2x1x32xf32>,
    %c0_60 = arith.constant 0 : index
    %c6 = arith.constant 6 : index
    %c0_61 = arith.constant 0 : index
    %204 = vector.load %arg2[%c0_60, %c6, %c0_61] : memref<2x8x128xf32, #tpu.memory_space<vmem>>, vector<2x1x128xf32>
    %205 = vector.shape_cast %204 : vector<2x1x128xf32> to vector<2x128xf32>
    %206 = arith.truncf %200 : vector<2x32xf32> to vector<2x32xbf16>
    %cst_62 = arith.constant dense<0.000000e+00> : vector<2x128xf32>
    %207 = tpu.matmul %206, %5, %cst_62 {dimension_numbers = #tpu.dot_dimension_numbers<[1], [0], [0], [1], [0, 0, 1, 1], [], []>} : vector<2x32xbf16>, vector<32x128xbf16>, vector<2x128xf32> -> vector<2x128xf32>
    %208 = arith.addf %205, %207 : vector<2x128xf32>
    %209 = vector.extract_strided_slice %208 {offsets = [0, 0], sizes = [2, 32], strides = [1, 1]} : vector<2x128xf32> to vector<2x32xf32>
    %210 = arith.negf %209 : vector<2x32xf32>
    %211 = math.exp %210 : vector<2x32xf32>
    %cst_63 = arith.constant 1.000000e+00 : f32
    %212 = vector.broadcast %cst_63 : f32 to vector<2x32xf32>
    %213 = arith.addf %212, %211 : vector<2x32xf32>
    %214 = arith.divf %212, %213 : vector<2x32xf32>
    %215 = vector.extract_strided_slice %208 {offsets = [0, 32], sizes = [2, 32], strides = [1, 1]} : vector<2x128xf32> to vector<2x32xf32>
    %216 = arith.negf %215 : vector<2x32xf32>
    %217 = math.exp %216 : vector<2x32xf32>
    %cst_64 = arith.constant 1.000000e+00 : f32
    %218 = vector.broadcast %cst_64 : f32 to vector<2x32xf32>
    %219 = arith.addf %218, %217 : vector<2x32xf32>
    %220 = arith.divf %218, %219 : vector<2x32xf32>
    %221 = vector.extract_strided_slice %208 {offsets = [0, 64], sizes = [2, 32], strides = [1, 1]} : vector<2x128xf32> to vector<2x32xf32>
    %222 = math.tanh %221 : vector<2x32xf32>
    %223 = vector.extract_strided_slice %208 {offsets = [0, 96], sizes = [2, 32], strides = [1, 1]} : vector<2x128xf32> to vector<2x32xf32>
    %224 = arith.negf %223 : vector<2x32xf32>
    %225 = math.exp %224 : vector<2x32xf32>
    %cst_65 = arith.constant 1.000000e+00 : f32
    %226 = vector.broadcast %cst_65 : f32 to vector<2x32xf32>
    %227 = arith.addf %226, %225 : vector<2x32xf32>
    %228 = arith.divf %226, %227 : vector<2x32xf32>
    %229 = arith.mulf %220, %198 : vector<2x32xf32>
    %230 = arith.mulf %214, %222 : vector<2x32xf32>
    %231 = arith.addf %229, %230 : vector<2x32xf32>
    %232 = math.tanh %231 : vector<2x32xf32>
    %233 = arith.mulf %228, %232 : vector<2x32xf32>
    %c0_66 = arith.constant 0 : index
    %c6_67 = arith.constant 6 : index
    %c0_68 = arith.constant 0 : index
    %234 = vector.load %arg6[%c0_66, %c6_67, %c0_68] : memref<2x8x32xf32, #tpu.memory_space<vmem>>, vector<2x1x32xf32>
    %235 = vector.shape_cast %234 : vector<2x1x32xf32> to vector<2x32xf32>
    %236 = vector.shape_cast %233 : vector<2x32xf32> to vector<2x1x32xf32>
    tpu.vector_store %arg6[%c0_66, %c6_67, %c0_68], %236 {strides = array<i32>} : memref<2x8x32xf32, #tpu.memory_space<vmem>>, vector<2x1x32xf32>,
    %c0_69 = arith.constant 0 : index
    %c7 = arith.constant 7 : index
    %c0_70 = arith.constant 0 : index
    %237 = vector.load %arg2[%c0_69, %c7, %c0_70] : memref<2x8x128xf32, #tpu.memory_space<vmem>>, vector<2x1x128xf32>
    %238 = vector.shape_cast %237 : vector<2x1x128xf32> to vector<2x128xf32>
    %239 = arith.truncf %233 : vector<2x32xf32> to vector<2x32xbf16>
    %cst_71 = arith.constant dense<0.000000e+00> : vector<2x128xf32>
    %240 = tpu.matmul %239, %5, %cst_71 {dimension_numbers = #tpu.dot_dimension_numbers<[1], [0], [0], [1], [0, 0, 1, 1], [], []>} : vector<2x32xbf16>, vector<32x128xbf16>, vector<2x128xf32> -> vector<2x128xf32>
    %241 = arith.addf %238, %240 : vector<2x128xf32>
    %242 = vector.extract_strided_slice %241 {offsets = [0, 0], sizes = [2, 32], strides = [1, 1]} : vector<2x128xf32> to vector<2x32xf32>
    %243 = arith.negf %242 : vector<2x32xf32>
    %244 = math.exp %243 : vector<2x32xf32>
    %cst_72 = arith.constant 1.000000e+00 : f32
    %245 = vector.broadcast %cst_72 : f32 to vector<2x32xf32>
    %246 = arith.addf %245, %244 : vector<2x32xf32>
    %247 = arith.divf %245, %246 : vector<2x32xf32>
    %248 = vector.extract_strided_slice %241 {offsets = [0, 32], sizes = [2, 32], strides = [1, 1]} : vector<2x128xf32> to vector<2x32xf32>
    %249 = arith.negf %248 : vector<2x32xf32>
    %250 = math.exp %249 : vector<2x32xf32>
    %cst_73 = arith.constant 1.000000e+00 : f32
    %251 = vector.broadcast %cst_73 : f32 to vector<2x32xf32>
    %252 = arith.addf %251, %250 : vector<2x32xf32>
    %253 = arith.divf %251, %252 : vector<2x32xf32>
    %254 = vector.extract_strided_slice %241 {offsets = [0, 64], sizes = [2, 32], strides = [1, 1]} : vector<2x128xf32> to vector<2x32xf32>
    %255 = math.tanh %254 : vector<2x32xf32>
    %256 = vector.extract_strided_slice %241 {offsets = [0, 96], sizes = [2, 32], strides = [1, 1]} : vector<2x128xf32> to vector<2x32xf32>
    %257 = arith.negf %256 : vector<2x32xf32>
    %258 = math.exp %257 : vector<2x32xf32>
    %cst_74 = arith.constant 1.000000e+00 : f32
    %259 = vector.broadcast %cst_74 : f32 to vector<2x32xf32>
    %260 = arith.addf %259, %258 : vector<2x32xf32>
    %261 = arith.divf %259, %260 : vector<2x32xf32>
    %262 = arith.mulf %253, %231 : vector<2x32xf32>
    %263 = arith.mulf %247, %255 : vector<2x32xf32>
    %264 = arith.addf %262, %263 : vector<2x32xf32>
    %265 = math.tanh %264 : vector<2x32xf32>
    %266 = arith.mulf %261, %265 : vector<2x32xf32>
    %c0_75 = arith.constant 0 : index
    %c7_76 = arith.constant 7 : index
    %c0_77 = arith.constant 0 : index
    %267 = vector.load %arg6[%c0_75, %c7_76, %c0_77] : memref<2x8x32xf32, #tpu.memory_space<vmem>>, vector<2x1x32xf32>
    %268 = vector.shape_cast %267 : vector<2x1x32xf32> to vector<2x32xf32>
    %269 = vector.shape_cast %266 : vector<2x32xf32> to vector<2x1x32xf32>
    tpu.vector_store %arg6[%c0_75, %c7_76, %c0_77], %269 {strides = array<i32>} : memref<2x8x32xf32, #tpu.memory_space<vmem>>, vector<2x1x32xf32>,
    %c0_78 = arith.constant 0 : index
    %c0_79 = arith.constant 0 : index
    %270 = vector.load %arg7[%c0_78, %c0_79] : memref<2x32xf32, #tpu.memory_space<vmem>>, vector<2x32xf32>
    tpu.vector_store %arg7[%c0_78, %c0_79], %266 {strides = array<i32>} : memref<2x32xf32, #tpu.memory_space<vmem>>, vector<2x32xf32>,
    %c0_80 = arith.constant 0 : index
    %c0_81 = arith.constant 0 : index
    %271 = vector.load %arg8[%c0_80, %c0_81] : memref<2x32xf32, #tpu.memory_space<vmem>>, vector<2x32xf32>
    tpu.vector_store %arg8[%c0_80, %c0_81], %264 {strides = array<i32>} : memref<2x32xf32, #tpu.memory_space<vmem>>, vector<2x32xf32>,
    return
  }
  func.func @transform_0(%arg0: i32, %arg1: i32) -> (i32, i32, i32) {
    %c0_i32 = arith.constant 0 : i32
    %c0_i32_0 = arith.constant 0 : i32
    return %arg0, %arg1, %c0_i32 : i32, i32, i32
  }
  func.func @transform_1(%arg0: i32, %arg1: i32) -> (i32, i32) {
    %c0_i32 = arith.constant 0 : i32
    %c0_i32_0 = arith.constant 0 : i32
    return %arg0, %c0_i32 : i32, i32
  }
  func.func @transform_2(%arg0: i32, %arg1: i32) -> (i32, i32) {
    %c0_i32 = arith.constant 0 : i32
    %c0_i32_0 = arith.constant 0 : i32
    return %arg0, %c0_i32 : i32, i32
  }
  func.func @transform_3(%arg0: i32, %arg1: i32) -> (i32, i32) {
    %c0_i32 = arith.constant 0 : i32
    %c0_i32_0 = arith.constant 0 : i32
    %c0_i32_1 = arith.constant 0 : i32
    return %c0_i32, %c0_i32_0 : i32, i32
  }
  func.func @transform_4(%arg0: i32, %arg1: i32) -> (i32, i32, i32) {
    %c0_i32 = arith.constant 0 : i32
    %c0_i32_0 = arith.constant 0 : i32
    return %arg0, %arg1, %c0_i32 : i32, i32, i32
  }
  func.func @transform_5(%arg0: i32, %arg1: i32) -> (i32, i32) {
    %c0_i32 = arith.constant 0 : i32
    %c0_i32_0 = arith.constant 0 : i32
    return %arg0, %c0_i32 : i32, i32
  }
  func.func @transform_6(%arg0: i32, %arg1: i32) -> (i32, i32) {
    %c0_i32 = arith.constant 0 : i32
    %c0_i32_0 = arith.constant 0 : i32
    return %arg0, %c0_i32 : i32, i32
  }
}

</mosaic_0001>

<llo_original>
// kernel: speller_forward.1
$region0: #{speller_forward.1}
  #allocation0 [shape = 'u32[]', space=smem, size = 0x4, offset = 0x4, fixed_abs, tag = 'smem constant byte address 0x4 - core index']
  #allocation1 [shape = 'u32[144,128]{1,0:T(1,128)}', space=vmem, size = 0x12000, scoped, tag = 'internal scratch']
  %s0 = inlined_call_operand.vmem [shape: f32[2,8,128], index: 0, kind: input, shape index: {}]
  %s1 = inlined_call_operand.vmem [shape: f32[2,32], index: 1, kind: input, shape index: {}]
  %s2 = inlined_call_operand.vmem [shape: f32[2,32], index: 2, kind: input, shape index: {}]
  %s3 = inlined_call_operand.vmem [shape: bf16[32,128], index: 3, kind: input, shape index: {}]
  %s4 = inlined_call_operand.vmem [shape: f32[2,8,32], index: 4, kind: output, shape index: {0}]
  %s5 = inlined_call_operand.hbm [shape: f32[2,32], index: 5, kind: output, shape index: {1}]
  %s6 = inlined_call_operand.hbm [shape: f32[2,32], index: 6, kind: output, shape index: {2}]
  %7 = xla_tuple %s4, %s5, %s6
  %s8 = sld [smem:[#allocation0]]
  $region46: #{speller_forward.1} parent=0
    _
  %s10 = ssub.s32 1, %s8
  %s11 = scalar_select 0, %s10, %s8
  $region1: #{speller_forward.1} parent=0
    #allocation2 [shape = 'u8[1024]{0}', space=vmem, size = 0x400, scoped, tag = 'output window, operand 1, single buffered']
    #allocation3 [shape = 's32[1]{0}', space=sflag, size = 0x4, scoped, tag = 'scoped memory for speller_forward.1']
    #allocation4 [shape = 'u8[1024]{0}', space=vmem, size = 0x400, scoped, tag = 'output window, operand 2, single buffered']
    #allocation5 [shape = 's32[1]{0}', space=sflag, size = 0x4, scoped, tag = 'scoped memory for speller_forward.1']
    %12 = vsyncpa [#allocation3], 0
    %13 = vsyncpa [#allocation5], 0
    // Predicated region
    $region2: #{speller_forward.1} parent=1 // pred_check
      _
    $region3: #{speller_forward.1} parent=1 // pred_check_branch
      %15 = sbr.rel (0) target = $region5
    $region4: #{speller_forward.1} parent=1 // pred_region
      _
    $region5: #{speller_forward.1} parent=1 // pred_fallthru
      _
    // Predicated region
    $region6: #{speller_forward.1} parent=1 // pred_check
      _
    $region7: #{speller_forward.1} parent=1 // pred_check_branch
      %17 = sbr.rel (0) target = $region9
    $region8: #{speller_forward.1} parent=1 // pred_region
      _
    $region9: #{speller_forward.1} parent=1 // pred_fallthru
      _
    // Predicated region
    $region10: #{speller_forward.1} parent=1 // pred_check
      _
    $region11: #{speller_forward.1} parent=1 // pred_check_branch
      %19 = sbr.rel (0) target = $region13
    $region12: #{speller_forward.1} parent=1 // pred_region
      _
    $region13: #{speller_forward.1} parent=1 // pred_fallthru
      _
    // Predicated region
    $region14: #{speller_forward.1} parent=1 // pred_check
      _
    $region15: #{speller_forward.1} parent=1 // pred_check_branch
      %21 = sbr.rel (0) target = $region17
    $region16: #{speller_forward.1} parent=1 // pred_region
      _
    $region17: #{speller_forward.1} parent=1 // pred_fallthru
      _
    %p23 = scmp.eq.s32.totalorder 0, 0
    // Predicated region
    $region18: #{speller_forward.1} parent=1 // pred_check
      %p24 = pneg %p23
    $region19: #{speller_forward.1} parent=1 // pred_check_branch
      %26 = sbr.rel (%p24) target = $region21
    $region20: #{speller_forward.1} parent=1 // pred_region
      %v27 = vld [vmem:[%s1] sm:$0x3]
      %vm28 = vcmask 254976
      %29 = vst.msk [vmem:[#allocation2] sm:$0x3] %vm28, %v27
      %v30 = vld [vmem:[%s2] sm:$0x3]
      %31 = vst.msk [vmem:[#allocation4] sm:$0x3] %vm28, %v30
    $region21: #{speller_forward.1} parent=1 // pred_fallthru
      _
    %v32 = vld [vmem:[#allocation2] sm:$0x3]
    %v33 = vld [vmem:[#allocation4] sm:$0x3]
    %v34 = vld [vmem:[%s3] sm:$0xf]
    %v35 = vld [vmem:[%s3 + $0x4] sm:$0xf]
    %v36 = vld [vmem:[%s3 + $0x8] sm:$0xf]
    %v37 = vld [vmem:[%s3 + $0xc] sm:$0xf]
    %v38 = vld [vmem:[%s0] sm:$0x1]
    %v39 = vld [vmem:[%s0 + $0x8] sm:$0x1]
    %v40 = vpack.c.bf16 %v32, %v32
    %v45 = vunpack.c.l.b16 %v34
    %v46 = vunpack.c.l.b16 %v35
    %v47 = vunpack.c.l.b16 %v36
    %v48 = vunpack.c.l.b16 %v37
    %v49 = vpack.c.b16 %v46, %v45
    %v50 = vpack.c.b16 %v48, %v47
    %vm53 = vcmask 261120
    %v55 = vsel %vm53, %v40, 0
    %57 = vmatprep.subr.bf16.mxu0 0
    %58 = vmatpush1.bf16.msra.mxu0 %v49
    %59 = vmatprep.subr.bf16.mxu0 0
    %60 = vmatpush1.bf16.msra.mxu0 %v50
    %61 = vmatprep.subr.bf16.mxu0 0
    %62 = vmatpush1.bf16.msra.mxu0 0
    %63 = vmatprep.subr.bf16.mxu0 0
    %64 = vmatpush1.bf16.msra.mxu0 0
    %65 = vmatprep.subr.bf16.mxu0 0
    %66 = vmatpush1.bf16.msra.mxu0 0
    %67 = vmatprep.subr.bf16.mxu0 0
    %68 = vmatpush1.bf16.msra.mxu0 0
    %69 = vmatprep.subr.bf16.mxu0 0
    %70 = vmatpush1.bf16.msra.mxu0 0
    %71 = vmatprep.subr.bf16.mxu0 0
    %72 = vmatpush1.bf16.msra.mxu0 0
    %73 = vmatprep.subr.bf16.mxu0 0
    %74 = vmatpush1.bf16.msra.mxu0 0
    %75 = vmatprep.subr.bf16.mxu0 0
    %76 = vmatpush1.bf16.msra.mxu0 0
    %77 = vmatprep.subr.bf16.mxu0 0
    %78 = vmatpush1.bf16.msra.mxu0 0
    %79 = vmatprep.subr.bf16.mxu0 0
    %80 = vmatpush1.bf16.msra.mxu0 0
    %81 = vmatprep.subr.bf16.mxu0 0
    %82 = vmatpush1.bf16.msra.mxu0 0
    %83 = vmatprep.subr.bf16.mxu0 0
    %84 = vmatpush1.bf16.msra.mxu0 0
    %85 = vmatprep.subr.bf16.mxu0 0
    %86 = vmatpush1.bf16.msra.mxu0 0
    %87 = vmatprep.subr.bf16.mxu0 0
    %88 = vmatpush1.bf16.msra.mxu0 0
    %89 = vmatprep.mubr.bf16.mxu0 0
    %90 = vmatmul.mubr.bf16.gmra.mrb[0].mxu0 %v55
    %v91 = vpop.f32.mrb[0].mxu0
    %v92 = vadd.f32 0.0, %v91
    %v93 = vpop.f32.mrb[0].mxu0
    %v94 = vpop.f32.mrb[0].mxu0
    %v95 = vpop.f32.mrb[0].mxu0
    %96 = vdwg.mxu0
    %v98 = vrot.slane %v92, 1
    %v101 = vadd.f32 %v38, %v92
    %v102 = vadd.f32 %v39, %v98
    %v103 = vxor.u32 %v101, 2147483648
    %v104 = vxor.u32 %v102, 2147483648
    %v105 = vmul.f32 %v103, 1.442695
    %v106 = vpow.pop %v105
    %v107 = vmul.f32 %v104, 1.442695
    %v108 = vpow.pop %v107
    %v109 = vadd.f32 %v106, 1.0
    %v110 = vadd.f32 %v108, 1.0
    %v111 = vrcp.pop %v109
    %v112 = vmul.f32 1.0, %v111
    %v113 = vrcp.pop %v110
    %v114 = vmul.f32 1.0, %v113
    %v115 = vtanh.pop %v101
    %v116 = vtanh.pop %v102
    %v118 = vrot.slane %v33, 1
    %119 = vrot.lane.b32.xlu0 %v33, 32
    %v120 = vpop.permute.xlu0 %119
    %121 = vrot.lane.b32.xlu0 %v118, 32
    %v122 = vpop.permute.xlu0 %121
    %v125 = vmul.f32 %v112, %v120
    %v126 = vmul.f32 %v114, %v122
    %129 = vrot.lane.b32.xlu0 %v115, 64
    %v130 = vpop.permute.xlu0 %129
    %131 = vrot.lane.b32.xlu0 %v116, 64
    %v132 = vpop.permute.xlu0 %131
    %v135 = vmul.f32 %v112, %v130
    %v136 = vmul.f32 %v114, %v132
    %139 = vrot.lane.b32.xlu0 %v135, 32
    %v140 = vpop.permute.xlu0 %139
    %141 = vrot.lane.b32.xlu0 %v136, 32
    %v142 = vpop.permute.xlu0 %141
    %v145 = vadd.f32 %v125, %v140
    %v146 = vadd.f32 %v126, %v142
    %v147 = vtanh.pop %v145
    %v148 = vtanh.pop %v146
    %151 = vrot.lane.b32.xlu0 %v147, 64
    %v152 = vpop.permute.xlu0 %151
    %153 = vrot.lane.b32.xlu0 %v148, 64
    %v154 = vpop.permute.xlu0 %153
    %v157 = vmul.f32 %v112, %v152
    %v158 = vmul.f32 %v114, %v154
    %161 = vrot.lane.b32.xlu0 %v157, 32
    %v162 = vpop.permute.xlu0 %161
    %163 = vrot.lane.b32.xlu0 %v158, 32
    %v164 = vpop.permute.xlu0 %163
    %vm167 = vcmask 253952
    %168 = vst.msk [vmem:[%s4] sm:$0x1] %vm167, %v162
    %169 = vst.msk [vmem:[%s4 + $0x8] sm:$0x1] %vm167, %v164
    %v170 = vld [vmem:[%s0 + $0x1] sm:$0x1]
    %v171 = vld [vmem:[%s0 + $0x9] sm:$0x1]
    %v172 = vpack.c.bf16 %v157, %v157
    %v173 = vpack.c.bf16 %v158, %v158
    %v176 = vunpack.c.l.b16 %v172
    %v177 = vunpack.c.l.b16 %v173
    %v178 = vrot.slane %v177, 7
    %vm179 = vcmask 1041409
    %v180 = vsel %vm179, %v178, %v176
    %v181 = vpack.c.b16 %v180, %v180
    %182 = vrot.lane.b32.xlu0 %v181, 32
    %v183 = vpop.permute.xlu0 %182
    %v185 = vsel %vm53, %v183, 0
    %187 = vmatprep.subr.bf16.mxu0 0
    %188 = vmatpush1.bf16.msra.mxu0 %v49
    %189 = vmatprep.subr.bf16.mxu0 0
    %190 = vmatpush1.bf16.msra.mxu0 %v50
    %191 = vmatprep.subr.bf16.mxu0 0
    %192 = vmatpush1.bf16.msra.mxu0 0
    %193 = vmatprep.subr.bf16.mxu0 0
    %194 = vmatpush1.bf16.msra.mxu0 0
    %195 = vmatprep.subr.bf16.mxu0 0
    %196 = vmatpush1.bf16.msra.mxu0 0
    %197 = vmatprep.subr.bf16.mxu0 0
    %198 = vmatpush1.bf16.msra.mxu0 0
    %199 = vmatprep.subr.bf16.mxu0 0
    %200 = vmatpush1.bf16.msra.mxu0 0
    %201 = vmatprep.subr.bf16.mxu0 0
    %202 = vmatpush1.bf16.msra.mxu0 0
    %203 = vmatprep.subr.bf16.mxu0 0
    %204 = vmatpush1.bf16.msra.mxu0 0
    %205 = vmatprep.subr.bf16.mxu0 0
    %206 = vmatpush1.bf16.msra.mxu0 0
    %207 = vmatprep.subr.bf16.mxu0 0
    %208 = vmatpush1.bf16.msra.mxu0 0
    %209 = vmatprep.subr.bf16.mxu0 0
    %210 = vmatpush1.bf16.msra.mxu0 0
    %211 = vmatprep.subr.bf16.mxu0 0
    %212 = vmatpush1.bf16.msra.mxu0 0
    %213 = vmatprep.subr.bf16.mxu0 0
    %214 = vmatpush1.bf16.msra.mxu0 0
    %215 = vmatprep.subr.bf16.mxu0 0
    %216 = vmatpush1.bf16.msra.mxu0 0
    %217 = vmatprep.subr.bf16.mxu0 0
    %218 = vmatpush1.bf16.msra.mxu0 0
    %219 = vmatprep.mubr.bf16.mxu0 0
    %220 = vmatmul.mubr.bf16.gmra.mrb[0].mxu0 %v185
    %v221 = vpop.f32.mrb[0].mxu0
    %v222 = vadd.f32 0.0, %v221
    %v223 = vpop.f32.mrb[0].mxu0
    %v224 = vpop.f32.mrb[0].mxu0
    %v225 = vpop.f32.mrb[0].mxu0
    %226 = vdwg.mxu0
    %v228 = vrot.slane %v222, 1
    %v231 = vadd.f32 %v170, %v222
    %v232 = vadd.f32 %v171, %v228
    %v233 = vxor.u32 %v231, 2147483648
    %v234 = vxor.u32 %v232, 2147483648
    %v235 = vmul.f32 %v233, 1.442695
    %v236 = vpow.pop %v235
    %v237 = vmul.f32 %v234, 1.442695
    %v238 = vpow.pop %v237
    %v239 = vadd.f32 %v236, 1.0
    %v240 = vadd.f32 %v238, 1.0
    %v241 = vrcp.pop %v239
    %v242 = vmul.f32 1.0, %v241
    %v243 = vrcp.pop %v240
    %v244 = vmul.f32 1.0, %v243
    %v245 = vtanh.pop %v231
    %v246 = vtanh.pop %v232
    %v247 = vmul.f32 %v242, %v145
    %v248 = vmul.f32 %v244, %v146
    %251 = vrot.lane.b32.xlu0 %v245, 64
    %v252 = vpop.permute.xlu0 %251
    %253 = vrot.lane.b32.xlu0 %v246, 64
    %v254 = vpop.permute.xlu0 %253
    %v257 = vmul.f32 %v242, %v252
    %v258 = vmul.f32 %v244, %v254
    %261 = vrot.lane.b32.xlu0 %v257, 32
    %v262 = vpop.permute.xlu0 %261
    %263 = vrot.lane.b32.xlu0 %v258, 32
    %v264 = vpop.permute.xlu0 %263
    %v267 = vadd.f32 %v247, %v262
    %v268 = vadd.f32 %v248, %v264
    %v269 = vtanh.pop %v267
    %v270 = vtanh.pop %v268
    %273 = vrot.lane.b32.xlu0 %v269, 64
    %v274 = vpop.permute.xlu0 %273
    %275 = vrot.lane.b32.xlu0 %v270, 64
    %v276 = vpop.permute.xlu0 %275
    %v279 = vmul.f32 %v242, %v274
    %v280 = vmul.f32 %v244, %v276
    %283 = vrot.lane.b32.xlu0 %v279, 32
    %v284 = vpop.permute.xlu0 %283
    %285 = vrot.lane.b32.xlu0 %v280, 32
    %v286 = vpop.permute.xlu0 %285
    %289 = vst.msk [vmem:[%s4 + $0x1] sm:$0x1] %vm167, %v284
    %290 = vst.msk [vmem:[%s4 + $0x9] sm:$0x1] %vm167, %v286
    %v291 = vld [vmem:[%s0 + $0x2] sm:$0x1]
    %v292 = vld [vmem:[%s0 + $0xa] sm:$0x1]
    %v293 = vpack.c.bf16 %v279, %v279
    %v294 = vpack.c.bf16 %v280, %v280
    %v297 = vunpack.c.l.b16 %v293
    %v298 = vunpack.c.l.b16 %v294
    %v299 = vrot.slane %v298, 7
    %v300 = vsel %vm179, %v299, %v297
    %v301 = vpack.c.b16 %v300, %v300
    %302 = vrot.lane.b32.xlu0 %v301, 32
    %v303 = vpop.permute.xlu0 %302
    %v305 = vsel %vm53, %v303, 0
    %307 = vmatprep.subr.bf16.mxu0 0
    %308 = vmatpush1.bf16.msra.mxu0 %v49
    %309 = vmatprep.subr.bf16.mxu0 0
    %310 = vmatpush1.bf16.msra.mxu0 %v50
    %311 = vmatprep.subr.bf16.mxu0 0
    %312 = vmatpush1.bf16.msra.mxu0 0
    %313 = vmatprep.subr.bf16.mxu0 0
    %314 = vmatpush1.bf16.msra.mxu0 0
    %315 = vmatprep.subr.bf16.mxu0 0
    %316 = vmatpush1.bf16.msra.mxu0 0
    %317 = vmatprep.subr.bf16.mxu0 0
    %318 = vmatpush1.bf16.msra.mxu0 0
    %319 = vmatprep.subr.bf16.mxu0 0
    %320 = vmatpush1.bf16.msra.mxu0 0
    %321 = vmatprep.subr.bf16.mxu0 0
    %322 = vmatpush1.bf16.msra.mxu0 0
    %323 = vmatprep.subr.bf16.mxu0 0
    %324 = vmatpush1.bf16.msra.mxu0 0
    %325 = vmatprep.subr.bf16.mxu0 0
    %326 = vmatpush1.bf16.msra.mxu0 0
    %327 = vmatprep.subr.bf16.mxu0 0
    %328 = vmatpush1.bf16.msra.mxu0 0
    %329 = vmatprep.subr.bf16.mxu0 0
    %330 = vmatpush1.bf16.msra.mxu0 0
    %331 = vmatprep.subr.bf16.mxu0 0
    %332 = vmatpush1.bf16.msra.mxu0 0
    %333 = vmatprep.subr.bf16.mxu0 0
    %334 = vmatpush1.bf16.msra.mxu0 0
    %335 = vmatprep.subr.bf16.mxu0 0
    %336 = vmatpush1.bf16.msra.mxu0 0
    %337 = vmatprep.subr.bf16.mxu0 0
    %338 = vmatpush1.bf16.msra.mxu0 0
    %339 = vmatprep.mubr.bf16.mxu0 0
    %340 = vmatmul.mubr.bf16.gmra.mrb[0].mxu0 %v305
    %v341 = vpop.f32.mrb[0].mxu0
    %v342 = vadd.f32 0.0, %v341
    %v343 = vpop.f32.mrb[0].mxu0
    %v344 = vpop.f32.mrb[0].mxu0
    %v345 = vpop.f32.mrb[0].mxu0
    %346 = vdwg.mxu0
    %v348 = vrot.slane %v342, 1
    %v351 = vadd.f32 %v291, %v342
    %v352 = vadd.f32 %v292, %v348
    %v353 = vxor.u32 %v351, 2147483648
    %v354 = vxor.u32 %v352, 2147483648
    %v355 = vmul.f32 %v353, 1.442695
    %v356 = vpow.pop %v355
    %v357 = vmul.f32 %v354, 1.442695
    %v358 = vpow.pop %v357
    %v359 = vadd.f32 %v356, 1.0
    %v360 = vadd.f32 %v358, 1.0
    %v361 = vrcp.pop %v359
    %v362 = vmul.f32 1.0, %v361
    %v363 = vrcp.pop %v360
    %v364 = vmul.f32 1.0, %v363
    %v365 = vtanh.pop %v351
    %v366 = vtanh.pop %v352
    %v367 = vmul.f32 %v362, %v267
    %v368 = vmul.f32 %v364, %v268
    %371 = vrot.lane.b32.xlu0 %v365, 64
    %v372 = vpop.permute.xlu0 %371
    %373 = vrot.lane.b32.xlu0 %v366, 64
    %v374 = vpop.permute.xlu0 %373
    %v377 = vmul.f32 %v362, %v372
    %v378 = vmul.f32 %v364, %v374
    %381 = vrot.lane.b32.xlu0 %v377, 32
    %v382 = vpop.permute.xlu0 %381
    %383 = vrot.lane.b32.xlu0 %v378, 32
    %v384 = vpop.permute.xlu0 %383
    %v387 = vadd.f32 %v367, %v382
    %v388 = vadd.f32 %v368, %v384
    %v389 = vtanh.pop %v387
    %v390 = vtanh.pop %v388
    %393 = vrot.lane.b32.xlu0 %v389, 64
    %v394 = vpop.permute.xlu0 %393
    %395 = vrot.lane.b32.xlu0 %v390, 64
    %v396 = vpop.permute.xlu0 %395
    %v399 = vmul.f32 %v362, %v394
    %v400 = vmul.f32 %v364, %v396
    %403 = vrot.lane.b32.xlu0 %v399, 32
    %v404 = vpop.permute.xlu0 %403
    %405 = vrot.lane.b32.xlu0 %v400, 32
    %v406 = vpop.permute.xlu0 %405
    %409 = vst.msk [vmem:[%s4 + $0x2] sm:$0x1] %vm167, %v404
    %410 = vst.msk [vmem:[%s4 + $0xa] sm:$0x1] %vm167, %v406
    %v411 = vld [vmem:[%s0 + $0x3] sm:$0x1]
    %v412 = vld [vmem:[%s0 + $0xb] sm:$0x1]
    %v413 = vpack.c.bf16 %v399, %v399
    %v414 = vpack.c.bf16 %v400, %v400
    %v417 = vunpack.c.l.b16 %v413
    %v418 = vunpack.c.l.b16 %v414
    %v419 = vrot.slane %v418, 7
    %v420 = vsel %vm179, %v419, %v417
    %v421 = vpack.c.b16 %v420, %v420
    %422 = vrot.lane.b32.xlu0 %v421, 32
    %v423 = vpop.permute.xlu0 %422
    %v425 = vsel %vm53, %v423, 0
    %427 = vmatprep.subr.bf16.mxu0 0
    %428 = vmatpush1.bf16.msra.mxu0 %v49
    %429 = vmatprep.subr.bf16.mxu0 0
    %430 = vmatpush1.bf16.msra.mxu0 %v50
    %431 = vmatprep.subr.bf16.mxu0 0
    %432 = vmatpush1.bf16.msra.mxu0 0
    %433 = vmatprep.subr.bf16.mxu0 0
    %434 = vmatpush1.bf16.msra.mxu0 0
    %435 = vmatprep.subr.bf16.mxu0 0
    %436 = vmatpush1.bf16.msra.mxu0 0
    %437 = vmatprep.subr.bf16.mxu0 0
    %438 = vmatpush1.bf16.msra.mxu0 0
    %439 = vmatprep.subr.bf16.mxu0 0
    %440 = vmatpush1.bf16.msra.mxu0 0
    %441 = vmatprep.subr.bf16.mxu0 0
    %442 = vmatpush1.bf16.msra.mxu0 0
    %443 = vmatprep.subr.bf16.mxu0 0
    %444 = vmatpush1.bf16.msra.mxu0 0
    %445 = vmatprep.subr.bf16.mxu0 0
    %446 = vmatpush1.bf16.msra.mxu0 0
    %447 = vmatprep.subr.bf16.mxu0 0
    %448 = vmatpush1.bf16.msra.mxu0 0
    %449 = vmatprep.subr.bf16.mxu0 0
    %450 = vmatpush1.bf16.msra.mxu0 0
    %451 = vmatprep.subr.bf16.mxu0 0
    %452 = vmatpush1.bf16.msra.mxu0 0
    %453 = vmatprep.subr.bf16.mxu0 0
    %454 = vmatpush1.bf16.msra.mxu0 0
    %455 = vmatprep.subr.bf16.mxu0 0
    %456 = vmatpush1.bf16.msra.mxu0 0
    %457 = vmatprep.subr.bf16.mxu0 0
    %458 = vmatpush1.bf16.msra.mxu0 0
    %459 = vmatprep.mubr.bf16.mxu0 0
    %460 = vmatmul.mubr.bf16.gmra.mrb[0].mxu0 %v425
    %v461 = vpop.f32.mrb[0].mxu0
    %v462 = vadd.f32 0.0, %v461
    %v463 = vpop.f32.mrb[0].mxu0
    %v464 = vpop.f32.mrb[0].mxu0
    %v465 = vpop.f32.mrb[0].mxu0
    %466 = vdwg.mxu0
    %v468 = vrot.slane %v462, 1
    %v471 = vadd.f32 %v411, %v462
    %v472 = vadd.f32 %v412, %v468
    %v473 = vxor.u32 %v471, 2147483648
    %v474 = vxor.u32 %v472, 2147483648
    %v475 = vmul.f32 %v473, 1.442695
    %v476 = vpow.pop %v475
    %v477 = vmul.f32 %v474, 1.442695
    %v478 = vpow.pop %v477
    %v479 = vadd.f32 %v476, 1.0
    %v480 = vadd.f32 %v478, 1.0
    %v481 = vrcp.pop %v479
    %v482 = vmul.f32 1.0, %v481
    %v483 = vrcp.pop %v480
    %v484 = vmul.f32 1.0, %v483
    %v485 = vtanh.pop %v471
    %v486 = vtanh.pop %v472
    %v487 = vmul.f32 %v482, %v387
    %v488 = vmul.f32 %v484, %v388
    %491 = vrot.lane.b32.xlu0 %v485, 64
    %v492 = vpop.permute.xlu0 %491
    %493 = vrot.lane.b32.xlu0 %v486, 64
    %v494 = vpop.permute.xlu0 %493
    %v497 = vmul.f32 %v482, %v492
    %v498 = vmul.f32 %v484, %v494
    %501 = vrot.lane.b32.xlu0 %v497, 32
    %v502 = vpop.permute.xlu0 %501
    %503 = vrot.lane.b32.xlu0 %v498, 32
    %v504 = vpop.permute.xlu0 %503
    %v507 = vadd.f32 %v487, %v502
    %v508 = vadd.f32 %v488, %v504
    %v509 = vtanh.pop %v507
    %v510 = vtanh.pop %v508
    %513 = vrot.lane.b32.xlu0 %v509, 64
    %v514 = vpop.permute.xlu0 %513
    %515 = vrot.lane.b32.xlu0 %v510, 64
    %v516 = vpop.permute.xlu0 %515
    %v519 = vmul.f32 %v482, %v514
    %v520 = vmul.f32 %v484, %v516
    %523 = vrot.lane.b32.xlu0 %v519, 32
    %v524 = vpop.permute.xlu0 %523
    %525 = vrot.lane.b32.xlu0 %v520, 32
    %v526 = vpop.permute.xlu0 %525
    %529 = vst.msk [vmem:[%s4 + $0x3] sm:$0x1] %vm167, %v524
    %530 = vst.msk [vmem:[%s4 + $0xb] sm:$0x1] %vm167, %v526
    %v531 = vld [vmem:[%s0 + $0x4] sm:$0x1]
    %v532 = vld [vmem:[%s0 + $0xc] sm:$0x1]
    %v533 = vpack.c.bf16 %v519, %v519
    %v534 = vpack.c.bf16 %v520, %v520
    %v537 = vunpack.c.l.b16 %v533
    %v538 = vunpack.c.l.b16 %v534
    %v539 = vrot.slane %v538, 7
    %v540 = vsel %vm179, %v539, %v537
    %v541 = vpack.c.b16 %v540, %v540
    %542 = vrot.lane.b32.xlu0 %v541, 32
    %v543 = vpop.permute.xlu0 %542
    %v545 = vsel %vm53, %v543, 0
    %547 = vmatprep.subr.bf16.mxu0 0
    %548 = vmatpush1.bf16.msra.mxu0 %v49
    %549 = vmatprep.subr.bf16.mxu0 0
    %550 = vmatpush1.bf16.msra.mxu0 %v50
    %551 = vmatprep.subr.bf16.mxu0 0
    %552 = vmatpush1.bf16.msra.mxu0 0
    %553 = vmatprep.subr.bf16.mxu0 0
    %554 = vmatpush1.bf16.msra.mxu0 0
    %555 = vmatprep.subr.bf16.mxu0 0
    %556 = vmatpush1.bf16.msra.mxu0 0
    %557 = vmatprep.subr.bf16.mxu0 0
    %558 = vmatpush1.bf16.msra.mxu0 0
    %559 = vmatprep.subr.bf16.mxu0 0
    %560 = vmatpush1.bf16.msra.mxu0 0
    %561 = vmatprep.subr.bf16.mxu0 0
    %562 = vmatpush1.bf16.msra.mxu0 0
    %563 = vmatprep.subr.bf16.mxu0 0
    %564 = vmatpush1.bf16.msra.mxu0 0
    %565 = vmatprep.subr.bf16.mxu0 0
    %566 = vmatpush1.bf16.msra.mxu0 0
    %567 = vmatprep.subr.bf16.mxu0 0
    %568 = vmatpush1.bf16.msra.mxu0 0
    %569 = vmatprep.subr.bf16.mxu0 0
    %570 = vmatpush1.bf16.msra.mxu0 0
    %571 = vmatprep.subr.bf16.mxu0 0
    %572 = vmatpush1.bf16.msra.mxu0 0
    %573 = vmatprep.subr.bf16.mxu0 0
    %574 = vmatpush1.bf16.msra.mxu0 0
    %575 = vmatprep.subr.bf16.mxu0 0
    %576 = vmatpush1.bf16.msra.mxu0 0
    %577 = vmatprep.subr.bf16.mxu0 0
    %578 = vmatpush1.bf16.msra.mxu0 0
    %579 = vmatprep.mubr.bf16.mxu0 0
    %580 = vmatmul.mubr.bf16.gmra.mrb[0].mxu0 %v545
    %v581 = vpop.f32.mrb[0].mxu0
    %v582 = vadd.f32 0.0, %v581
    %v583 = vpop.f32.mrb[0].mxu0
    %v584 = vpop.f32.mrb[0].mxu0
    %v585 = vpop.f32.mrb[0].mxu0
    %586 = vdwg.mxu0
    %v588 = vrot.slane %v582, 1
    %v591 = vadd.f32 %v531, %v582
    %v592 = vadd.f32 %v532, %v588
    %v593 = vxor.u32 %v591, 2147483648
    %v594 = vxor.u32 %v592, 2147483648
    %v595 = vmul.f32 %v593, 1.442695
    %v596 = vpow.pop %v595
    %v597 = vmul.f32 %v594, 1.442695
    %v598 = vpow.pop %v597
    %v599 = vadd.f32 %v596, 1.0
    %v600 = vadd.f32 %v598, 1.0
    %v601 = vrcp.pop %v599
    %v602 = vmul.f32 1.0, %v601
    %v603 = vrcp.pop %v600
    %v604 = vmul.f32 1.0, %v603
    %v605 = vtanh.pop %v591
    %v606 = vtanh.pop %v592
    %v607 = vmul.f32 %v602, %v507
    %v608 = vmul.f32 %v604, %v508
    %611 = vrot.lane.b32.xlu0 %v605, 64
    %v612 = vpop.permute.xlu0 %611
    %613 = vrot.lane.b32.xlu0 %v606, 64
    %v614 = vpop.permute.xlu0 %613
    %v617 = vmul.f32 %v602, %v612
    %v618 = vmul.f32 %v604, %v614
    %621 = vrot.lane.b32.xlu0 %v617, 32
    %v622 = vpop.permute.xlu0 %621
    %623 = vrot.lane.b32.xlu0 %v618, 32
    %v624 = vpop.permute.xlu0 %623
    %v627 = vadd.f32 %v607, %v622
    %v628 = vadd.f32 %v608, %v624
    %v629 = vtanh.pop %v627
    %v630 = vtanh.pop %v628
    %633 = vrot.lane.b32.xlu0 %v629, 64
    %v634 = vpop.permute.xlu0 %633
    %635 = vrot.lane.b32.xlu0 %v630, 64
    %v636 = vpop.permute.xlu0 %635
    %v639 = vmul.f32 %v602, %v634
    %v640 = vmul.f32 %v604, %v636
    %643 = vrot.lane.b32.xlu0 %v639, 32
    %v644 = vpop.permute.xlu0 %643
    %645 = vrot.lane.b32.xlu0 %v640, 32
    %v646 = vpop.permute.xlu0 %645
    %649 = vst.msk [vmem:[%s4 + $0x4] sm:$0x1] %vm167, %v644
    %650 = vst.msk [vmem:[%s4 + $0xc] sm:$0x1] %vm167, %v646
    %v651 = vld [vmem:[%s0 + $0x5] sm:$0x1]
    %v652 = vld [vmem:[%s0 + $0xd] sm:$0x1]
    %v653 = vpack.c.bf16 %v639, %v639
    %v654 = vpack.c.bf16 %v640, %v640
    %v657 = vunpack.c.l.b16 %v653
    %v658 = vunpack.c.l.b16 %v654
    %v659 = vrot.slane %v658, 7
    %v660 = vsel %vm179, %v659, %v657
    %v661 = vpack.c.b16 %v660, %v660
    %662 = vrot.lane.b32.xlu0 %v661, 32
    %v663 = vpop.permute.xlu0 %662
    %v665 = vsel %vm53, %v663, 0
    %667 = vmatprep.subr.bf16.mxu0 0
    %668 = vmatpush1.bf16.msra.mxu0 %v49
    %669 = vmatprep.subr.bf16.mxu0 0
    %670 = vmatpush1.bf16.msra.mxu0 %v50
    %671 = vmatprep.subr.bf16.mxu0 0
    %672 = vmatpush1.bf16.msra.mxu0 0
    %673 = vmatprep.subr.bf16.mxu0 0
    %674 = vmatpush1.bf16.msra.mxu0 0
    %675 = vmatprep.subr.bf16.mxu0 0
    %676 = vmatpush1.bf16.msra.mxu0 0
    %677 = vmatprep.subr.bf16.mxu0 0
    %678 = vmatpush1.bf16.msra.mxu0 0
    %679 = vmatprep.subr.bf16.mxu0 0
    %680 = vmatpush1.bf16.msra.mxu0 0
    %681 = vmatprep.subr.bf16.mxu0 0
    %682 = vmatpush1.bf16.msra.mxu0 0
    %683 = vmatprep.subr.bf16.mxu0 0
    %684 = vmatpush1.bf16.msra.mxu0 0
    %685 = vmatprep.subr.bf16.mxu0 0
    %686 = vmatpush1.bf16.msra.mxu0 0
    %687 = vmatprep.subr.bf16.mxu0 0
    %688 = vmatpush1.bf16.msra.mxu0 0
    %689 = vmatprep.subr.bf16.mxu0 0
    %690 = vmatpush1.bf16.msra.mxu0 0
    %691 = vmatprep.subr.bf16.mxu0 0
    %692 = vmatpush1.bf16.msra.mxu0 0
    %693 = vmatprep.subr.bf16.mxu0 0
    %694 = vmatpush1.bf16.msra.mxu0 0
    %695 = vmatprep.subr.bf16.mxu0 0
    %696 = vmatpush1.bf16.msra.mxu0 0
    %697 = vmatprep.subr.bf16.mxu0 0
    %698 = vmatpush1.bf16.msra.mxu0 0
    %699 = vmatprep.mubr.bf16.mxu0 0
    %700 = vmatmul.mubr.bf16.gmra.mrb[0].mxu0 %v665
    %v701 = vpop.f32.mrb[0].mxu0
    %v702 = vadd.f32 0.0, %v701
    %v703 = vpop.f32.mrb[0].mxu0
    %v704 = vpop.f32.mrb[0].mxu0
    %v705 = vpop.f32.mrb[0].mxu0
    %706 = vdwg.mxu0
    %v708 = vrot.slane %v702, 1
    %v711 = vadd.f32 %v651, %v702
    %v712 = vadd.f32 %v652, %v708
    %v713 = vxor.u32 %v711, 2147483648
    %v714 = vxor.u32 %v712, 2147483648
    %v715 = vmul.f32 %v713, 1.442695
    %v716 = vpow.pop %v715
    %v717 = vmul.f32 %v714, 1.442695
    %v718 = vpow.pop %v717
    %v719 = vadd.f32 %v716, 1.0
    %v720 = vadd.f32 %v718, 1.0
    %v721 = vrcp.pop %v719
    %v722 = vmul.f32 1.0, %v721
    %v723 = vrcp.pop %v720
    %v724 = vmul.f32 1.0, %v723
    %v725 = vtanh.pop %v711
    %v726 = vtanh.pop %v712
    %v727 = vmul.f32 %v722, %v627
    %v728 = vmul.f32 %v724, %v628
    %731 = vrot.lane.b32.xlu0 %v725, 64
    %v732 = vpop.permute.xlu0 %731
    %733 = vrot.lane.b32.xlu0 %v726, 64
    %v734 = vpop.permute.xlu0 %733
    %v737 = vmul.f32 %v722, %v732
    %v738 = vmul.f32 %v724, %v734
    %741 = vrot.lane.b32.xlu0 %v737, 32
    %v742 = vpop.permute.xlu0 %741
    %743 = vrot.lane.b32.xlu0 %v738, 32
    %v744 = vpop.permute.xlu0 %743
    %v747 = vadd.f32 %v727, %v742
    %v748 = vadd.f32 %v728, %v744
    %v749 = vtanh.pop %v747
    %v750 = vtanh.pop %v748
    %753 = vrot.lane.b32.xlu0 %v749, 64
    %v754 = vpop.permute.xlu0 %753
    %755 = vrot.lane.b32.xlu0 %v750, 64
    %v756 = vpop.permute.xlu0 %755
    %v759 = vmul.f32 %v722, %v754
    %v760 = vmul.f32 %v724, %v756
    %763 = vrot.lane.b32.xlu0 %v759, 32
    %v764 = vpop.permute.xlu0 %763
    %765 = vrot.lane.b32.xlu0 %v760, 32
    %v766 = vpop.permute.xlu0 %765
    %769 = vst.msk [vmem:[%s4 + $0x5] sm:$0x1] %vm167, %v764
    %770 = vst.msk [vmem:[%s4 + $0xd] sm:$0x1] %vm167, %v766
    %v771 = vld [vmem:[%s0 + $0x6] sm:$0x1]
    %v772 = vld [vmem:[%s0 + $0xe] sm:$0x1]
    %v773 = vpack.c.bf16 %v759, %v759
    %v774 = vpack.c.bf16 %v760, %v760
    %v777 = vunpack.c.l.b16 %v773
    %v778 = vunpack.c.l.b16 %v774
    %v779 = vrot.slane %v778, 7
    %v780 = vsel %vm179, %v779, %v777
    %v781 = vpack.c.b16 %v780, %v780
    %782 = vrot.lane.b32.xlu0 %v781, 32
    %v783 = vpop.permute.xlu0 %782
    %v785 = vsel %vm53, %v783, 0
    %787 = vmatprep.subr.bf16.mxu0 0
    %788 = vmatpush1.bf16.msra.mxu0 %v49
    %789 = vmatprep.subr.bf16.mxu0 0
    %790 = vmatpush1.bf16.msra.mxu0 %v50
    %791 = vmatprep.subr.bf16.mxu0 0
    %792 = vmatpush1.bf16.msra.mxu0 0
    %793 = vmatprep.subr.bf16.mxu0 0
    %794 = vmatpush1.bf16.msra.mxu0 0
    %795 = vmatprep.subr.bf16.mxu0 0
    %796 = vmatpush1.bf16.msra.mxu0 0
    %797 = vmatprep.subr.bf16.mxu0 0
    %798 = vmatpush1.bf16.msra.mxu0 0
    %799 = vmatprep.subr.bf16.mxu0 0
    %800 = vmatpush1.bf16.msra.mxu0 0
    %801 = vmatprep.subr.bf16.mxu0 0
    %802 = vmatpush1.bf16.msra.mxu0 0
    %803 = vmatprep.subr.bf16.mxu0 0
    %804 = vmatpush1.bf16.msra.mxu0 0
    %805 = vmatprep.subr.bf16.mxu0 0
    %806 = vmatpush1.bf16.msra.mxu0 0
    %807 = vmatprep.subr.bf16.mxu0 0
    %808 = vmatpush1.bf16.msra.mxu0 0
    %809 = vmatprep.subr.bf16.mxu0 0
    %810 = vmatpush1.bf16.msra.mxu0 0
    %811 = vmatprep.subr.bf16.mxu0 0
    %812 = vmatpush1.bf16.msra.mxu0 0
    %813 = vmatprep.subr.bf16.mxu0 0
    %814 = vmatpush1.bf16.msra.mxu0 0
    %815 = vmatprep.subr.bf16.mxu0 0
    %816 = vmatpush1.bf16.msra.mxu0 0
    %817 = vmatprep.subr.bf16.mxu0 0
    %818 = vmatpush1.bf16.msra.mxu0 0
    %819 = vmatprep.mubr.bf16.mxu0 0
    %820 = vmatmul.mubr.bf16.gmra.mrb[0].mxu0 %v785
    %v821 = vpop.f32.mrb[0].mxu0
    %v822 = vadd.f32 0.0, %v821
    %v823 = vpop.f32.mrb[0].mxu0
    %v824 = vpop.f32.mrb[0].mxu0
    %v825 = vpop.f32.mrb[0].mxu0
    %826 = vdwg.mxu0
    %v828 = vrot.slane %v822, 1
    %v831 = vadd.f32 %v771, %v822
    %v832 = vadd.f32 %v772, %v828
    %v833 = vxor.u32 %v831, 2147483648
    %v834 = vxor.u32 %v832, 2147483648
    %v835 = vmul.f32 %v833, 1.442695
    %v836 = vpow.pop %v835
    %v837 = vmul.f32 %v834, 1.442695
    %v838 = vpow.pop %v837
    %v839 = vadd.f32 %v836, 1.0
    %v840 = vadd.f32 %v838, 1.0
    %v841 = vrcp.pop %v839
    %v842 = vmul.f32 1.0, %v841
    %v843 = vrcp.pop %v840
    %v844 = vmul.f32 1.0, %v843
    %v845 = vtanh.pop %v831
    %v846 = vtanh.pop %v832
    %v847 = vmul.f32 %v842, %v747
    %v848 = vmul.f32 %v844, %v748
    %851 = vrot.lane.b32.xlu0 %v845, 64
    %v852 = vpop.permute.xlu0 %851
    %853 = vrot.lane.b32.xlu0 %v846, 64
    %v854 = vpop.permute.xlu0 %853
    %v857 = vmul.f32 %v842, %v852
    %v858 = vmul.f32 %v844, %v854
    %861 = vrot.lane.b32.xlu0 %v857, 32
    %v862 = vpop.permute.xlu0 %861
    %863 = vrot.lane.b32.xlu0 %v858, 32
    %v864 = vpop.permute.xlu0 %863
    %v867 = vadd.f32 %v847, %v862
    %v868 = vadd.f32 %v848, %v864
    %v869 = vtanh.pop %v867
    %v870 = vtanh.pop %v868
    %873 = vrot.lane.b32.xlu0 %v869, 64
    %v874 = vpop.permute.xlu0 %873
    %875 = vrot.lane.b32.xlu0 %v870, 64
    %v876 = vpop.permute.xlu0 %875
    %v879 = vmul.f32 %v842, %v874
    %v880 = vmul.f32 %v844, %v876
    %883 = vrot.lane.b32.xlu0 %v879, 32
    %v884 = vpop.permute.xlu0 %883
    %885 = vrot.lane.b32.xlu0 %v880, 32
    %v886 = vpop.permute.xlu0 %885
    %889 = vst.msk [vmem:[%s4 + $0x6] sm:$0x1] %vm167, %v884
    %890 = vst.msk [vmem:[%s4 + $0xe] sm:$0x1] %vm167, %v886
    %v891 = vld [vmem:[%s0 + $0x7] sm:$0x1]
    %v892 = vld [vmem:[%s0 + $0xf] sm:$0x1]
    %v893 = vpack.c.bf16 %v879, %v879
    %v894 = vpack.c.bf16 %v880, %v880
    %v897 = vunpack.c.l.b16 %v893
    %v898 = vunpack.c.l.b16 %v894
    %v899 = vrot.slane %v898, 7
    %v900 = vsel %vm179, %v899, %v897
    %v901 = vpack.c.b16 %v900, %v900
    %902 = vrot.lane.b32.xlu0 %v901, 32
    %v903 = vpop.permute.xlu0 %902
    %v905 = vsel %vm53, %v903, 0
    %907 = vmatprep.subr.bf16.mxu0 0
    %908 = vmatpush1.bf16.msra.mxu0 %v49
    %909 = vmatprep.subr.bf16.mxu0 0
    %910 = vmatpush1.bf16.msra.mxu0 %v50
    %911 = vmatprep.subr.bf16.mxu0 0
    %912 = vmatpush1.bf16.msra.mxu0 0
    %913 = vmatprep.subr.bf16.mxu0 0
    %914 = vmatpush1.bf16.msra.mxu0 0
    %915 = vmatprep.subr.bf16.mxu0 0
    %916 = vmatpush1.bf16.msra.mxu0 0
    %917 = vmatprep.subr.bf16.mxu0 0
    %918 = vmatpush1.bf16.msra.mxu0 0
    %919 = vmatprep.subr.bf16.mxu0 0
    %920 = vmatpush1.bf16.msra.mxu0 0
    %921 = vmatprep.subr.bf16.mxu0 0
    %922 = vmatpush1.bf16.msra.mxu0 0
    %923 = vmatprep.subr.bf16.mxu0 0
    %924 = vmatpush1.bf16.msra.mxu0 0
    %925 = vmatprep.subr.bf16.mxu0 0
    %926 = vmatpush1.bf16.msra.mxu0 0
    %927 = vmatprep.subr.bf16.mxu0 0
    %928 = vmatpush1.bf16.msra.mxu0 0
    %929 = vmatprep.subr.bf16.mxu0 0
    %930 = vmatpush1.bf16.msra.mxu0 0
    %931 = vmatprep.subr.bf16.mxu0 0
    %932 = vmatpush1.bf16.msra.mxu0 0
    %933 = vmatprep.subr.bf16.mxu0 0
    %934 = vmatpush1.bf16.msra.mxu0 0
    %935 = vmatprep.subr.bf16.mxu0 0
    %936 = vmatpush1.bf16.msra.mxu0 0
    %937 = vmatprep.subr.bf16.mxu0 0
    %938 = vmatpush1.bf16.msra.mxu0 0
    %939 = vmatprep.mubr.bf16.mxu0 0
    %940 = vmatmul.mubr.bf16.gmra.mrb[0].mxu0 %v905
    %v941 = vpop.f32.mrb[0].mxu0
    %v942 = vadd.f32 0.0, %v941
    %v943 = vpop.f32.mrb[0].mxu0
    %v944 = vpop.f32.mrb[0].mxu0
    %v945 = vpop.f32.mrb[0].mxu0
    %946 = vdwg.mxu0
    %v948 = vrot.slane %v942, 1
    %v951 = vadd.f32 %v891, %v942
    %v952 = vadd.f32 %v892, %v948
    %v953 = vxor.u32 %v951, 2147483648
    %v954 = vxor.u32 %v952, 2147483648
    %v955 = vmul.f32 %v953, 1.442695
    %v956 = vpow.pop %v955
    %v957 = vmul.f32 %v954, 1.442695
    %v958 = vpow.pop %v957
    %v959 = vadd.f32 %v956, 1.0
    %v960 = vadd.f32 %v958, 1.0
    %v961 = vrcp.pop %v959
    %v962 = vmul.f32 1.0, %v961
    %v963 = vrcp.pop %v960
    %v964 = vmul.f32 1.0, %v963
    %v965 = vtanh.pop %v951
    %v966 = vtanh.pop %v952
    %v967 = vmul.f32 %v962, %v867
    %v968 = vmul.f32 %v964, %v868
    %971 = vrot.lane.b32.xlu0 %v965, 64
    %v972 = vpop.permute.xlu0 %971
    %973 = vrot.lane.b32.xlu0 %v966, 64
    %v974 = vpop.permute.xlu0 %973
    %v977 = vmul.f32 %v962, %v972
    %v978 = vmul.f32 %v964, %v974
    %981 = vrot.lane.b32.xlu0 %v977, 32
    %v982 = vpop.permute.xlu0 %981
    %983 = vrot.lane.b32.xlu0 %v978, 32
    %v984 = vpop.permute.xlu0 %983
    %v987 = vadd.f32 %v967, %v982
    %v988 = vadd.f32 %v968, %v984
    %v989 = vtanh.pop %v987
    %v990 = vtanh.pop %v988
    %993 = vrot.lane.b32.xlu0 %v989, 64
    %v994 = vpop.permute.xlu0 %993
    %995 = vrot.lane.b32.xlu0 %v990, 64
    %v996 = vpop.permute.xlu0 %995
    %v999 = vmul.f32 %v962, %v994
    %v1000 = vmul.f32 %v964, %v996
    %1003 = vrot.lane.b32.xlu0 %v999, 32
    %v1004 = vpop.permute.xlu0 %1003
    %1005 = vrot.lane.b32.xlu0 %v1000, 32
    %v1006 = vpop.permute.xlu0 %1005
    %1009 = vst.msk [vmem:[%s4 + $0x7] sm:$0x1] %vm167, %v1004
    %1010 = vst.msk [vmem:[%s4 + $0xf] sm:$0x1] %vm167, %v1006
    %v1011 = vrot.slane %v1000, 7
    %v1012 = vsel %vm179, %v1011, %v999
    %1013 = vrot.lane.b32.xlu0 %v1012, 32
    %v1014 = vpop.permute.xlu0 %1013
    %vm1016 = vcmask 254976
    %1017 = vst.msk [vmem:[#allocation2] sm:$0x3] %vm1016, %v1014
    %v1020 = vrot.slane %v988, 7
    %v1021 = vsel %vm179, %v1020, %v987
    %1022 = vrot.lane.b32.xlu0 %v1021, 96
    %v1023 = vpop.permute.xlu0 %1022
    %1025 = vst.msk [vmem:[#allocation4] sm:$0x3] %vm1016, %v1023
    // Predicated region
    $region22: #{speller_forward.1} parent=1 // pred_check
      _
    $region23: #{speller_forward.1} parent=1 // pred_check_branch
      %1027 = sbr.rel (0) target = $region25
    $region24: #{speller_forward.1} parent=1 // pred_region
      _
    $region25: #{speller_forward.1} parent=1 // pred_fallthru
      _
    // Predicated region
    $region26: #{speller_forward.1} parent=1 // pred_check
      _
    $region27: #{speller_forward.1} parent=1 // pred_check_branch
      %1029 = sbr.rel (0) target = $region29
    $region28: #{speller_forward.1} parent=1 // pred_region
      %s1031 = ssub.s32 32, 32
      %1032 = vsyncadd [#allocation3], %s1031
      %s1034 = sshll.u32 [#allocation2], 4
      %s1035 = int_to_ptr.vmem [resolvable:$true] %s1034
      %1037 = dma.vmem_to_hbm [thread:$0]  %s1035, 32, %s5, [#allocation3]
    $region29: #{speller_forward.1} parent=1 // pred_fallthru
      _
    // Predicated region
    $region30: #{speller_forward.1} parent=1 // pred_check
      _
    $region31: #{speller_forward.1} parent=1 // pred_check_branch
      %1039 = sbr.rel (0) target = $region33
    $region32: #{speller_forward.1} parent=1 // pred_region
      %s1041 = ssub.s32 32, 32
      %1042 = vsyncadd [#allocation5], %s1041
      %s1044 = sshll.u32 [#allocation4], 4
      %s1045 = int_to_ptr.vmem [resolvable:$true] %s1044
      %1047 = dma.vmem_to_hbm [thread:$0]  %s1045, 32, %s6, [#allocation5]
    $region33: #{speller_forward.1} parent=1 // pred_fallthru
      _
    // Predicated region
    $region34: #{speller_forward.1} parent=1 // pred_check
      _
    $region35: #{speller_forward.1} parent=1 // pred_check_branch
      %1049 = sbr.rel (0) target = $region37
    $region36: #{speller_forward.1} parent=1 // pred_region
      _
    $region37: #{speller_forward.1} parent=1 // pred_fallthru
      _
    // Predicated region
    $region38: #{speller_forward.1} parent=1 // pred_check
      _
    $region39: #{speller_forward.1} parent=1 // pred_check_branch
      %1051 = sbr.rel (0) target = $region41
    $region40: #{speller_forward.1} parent=1 // pred_region
      %1052 = dma.done [#allocation3], 32
    $region41: #{speller_forward.1} parent=1 // pred_fallthru
      _
    // Predicated region
    $region42: #{speller_forward.1} parent=1 // pred_check
      _
    $region43: #{speller_forward.1} parent=1 // pred_check_branch
      %1054 = sbr.rel (0) target = $region45
    $region44: #{speller_forward.1} parent=1 // pred_region
      %1055 = dma.done [#allocation5], 32
    $region45: #{speller_forward.1} parent=1 // pred_fallthru
      _
    %1056 = vsyncpa [#allocation3], 1
    %1057 = vsyncpa [#allocation5], 1

</llo_original>
